<compile_context>
chip_gen: v7x
topology: tpu7x:2x2x1
jax: 0.10.0
libtpu: 0.0.40
codegen_flags: <defaults>
</compile_context>

<pallas_src>
import functools

import jax
import jax.numpy as jnp
from jax.experimental import pallas as pl
from jax.experimental.pallas import tpu as pltpu


def _round_up(a, m):
    return (a + m - 1) // m * m


def _device_kind():
    try:
        return jax.devices()[0].device_kind.lower()
    except Exception:
        return ""


def _is_pre_v6(kind):
    # v5e/v5p and older: no bf16 VPU/EUP path -> keep f32 activations, smaller tiles.
    return any(tag in kind for tag in ("v2", "v3", "v4", "v5"))


def _fnn_kernel(x_ref, w1_ref, b1_ref, w2_ref, b2_ref, w3_ref, b3_ref, o_ref,
                *, act_dtype):
    # ---- layer 1: sigmoid(x @ W1 + b1); in-kernel f32->bf16 cast, MXU, f32 accumulate ----
    x = x_ref[...].astype(jnp.bfloat16)                        # near-free VPU cast
    z1 = jnp.dot(x, w1_ref[...], preferred_element_type=jnp.float32) + b1_ref[...]
    z1 = z1.astype(act_dtype)
    # single-transcendental sigmoid: sigmoid(z) = 0.5 * tanh(0.5 z) + 0.5  (1 EUP push)
    h1 = 0.5 * jnp.tanh(0.5 * z1) + 0.5

    # ---- layer 2: softplus(h1 @ W2 + b2) ----
    z2 = jnp.dot(h1.astype(jnp.bfloat16), w2_ref[...],
                 preferred_element_type=jnp.float32) + b2_ref[...]
    z2 = z2.astype(act_dtype)
    # numerically stable softplus: max(x, 0) + log1p(exp(-|x|))
    h2 = jnp.maximum(z2, 0.0) + jnp.log1p(jnp.exp(-jnp.abs(z2)))

    # ---- layer 3: (TB, n3) @ (n3, 1) on the nearly idle MXU (frees the XLU reduce);
    #      f32 accumulate, b3 is an SMEM scalar ----
    z3 = jnp.dot(h2.astype(jnp.bfloat16), w3_ref[...],
                 preferred_element_type=jnp.float32) + b3_ref[0, 0]
    o_ref[...] = z3.astype(o_ref.dtype)


def fnn_forward(x, w1, b1, w2, b2, w3, b3, *, max_tile=None, act_dtype=None):
    """x: (B, n1); w1:(n1,n2) b1:(1,n2); w2:(n2,n3) b2:(1,n3); w3:(n3,1) b3:(1,1).
    Returns (B, 1) float32."""
    B, n1 = x.shape
    n2 = w1.shape[1]
    n3 = w2.shape[1]

    kind = _device_kind()
    if act_dtype is None:
        # bf16 EUP/VPU only on v6e/v7x; keep f32 activations on v5e and older.
        act_dtype = jnp.float32 if _is_pre_v6(kind) else jnp.bfloat16
    if max_tile is None:
        max_tile = 4096 if _is_pre_v6(kind) else 8192

    # Pad rows only up to a sublane multiple (<= 7 rows); the grid covers the rest with a
    # ragged last block (out-of-range rows are padded on read, masked on writeback).
    B8 = _round_up(B, 8)
    if B8 != B:
        x = jnp.pad(x, ((0, B8 - B), (0, 0)))

    # Few, large grid steps (per-step pipeline overhead ~0.35us). Keep the step count even
    # so megacore / 2-TC chips shard the "parallel" batch axis without a 2:1 imbalance.
    n_steps = max(1, pl.cdiv(B8, max_tile))
    if n_steps > 1 and n_steps % 2:
        n_steps += 1
    TB = min(_round_up(pl.cdiv(B8, n_steps), 8), B8)
    grid = pl.cdiv(B8, TB)

    # bf16 for the (tiny, VMEM-resident) weights; biases f32; b3 an SMEM scalar.
    w1_bf = w1.astype(jnp.bfloat16)
    w2_bf = w2.astype(jnp.bfloat16)
    w3_bf = w3.reshape(n3, 1).astype(jnp.bfloat16)
    b1_f = b1.reshape(1, n2).astype(jnp.float32)
    b2_f = b2.reshape(1, n3).astype(jnp.float32)
    b3_s = b3.reshape(1, 1).astype(jnp.float32)

    # VMEM budget: narrow operands lane-pad to 128; x/out double-buffered + f32 temps is
    # roughly TB * 4 KiB. Cap at 48 MiB so it also fits v7x's 64 MiB physical VMEM.
    vmem_bytes = int(min(48 << 20, max(16 << 20, TB * 4096 + (8 << 20))))

    const2 = lambda i: (0, 0)  # weights/biases: same block every step -> VMEM-resident

    out = pl.pallas_call(
        functools.partial(_fnn_kernel, act_dtype=act_dtype),
        out_shape=jax.ShapeDtypeStruct((B8, 1), jnp.float32),
        grid=(grid,),
        in_specs=[
            pl.BlockSpec((TB, n1), lambda i: (i, 0)),   # streamed x, double-buffered
            pl.BlockSpec((n1, n2), const2),
            pl.BlockSpec((1, n2), const2),
            pl.BlockSpec((n2, n3), const2),
            pl.BlockSpec((1, n3), const2),
            pl.BlockSpec((n3, 1), const2),
            pl.BlockSpec(memory_space=pltpu.MemorySpace.SMEM),  # b3 scalar
        ],
        out_specs=pl.BlockSpec((TB, 1), lambda i: (i, 0)),
        compiler_params=pltpu.CompilerParams(
            dimension_semantics=("parallel",),          # shard batch axis across TCs
            vmem_limit_bytes=vmem_bytes,
        ),
    )(x, w1_bf, b1_f, w2_bf, b2_f, w3_bf, b3_s)
    return out[:B]


def init_fnn_params(key, n1, n2, n3):
    """Deterministic init mimicking torch.nn.Linear default (U(-1/sqrt(fan_in), +))."""
    def linear(k, fan_in, fan_out):
        kw, kb = jax.random.split(k)
        bound = 1.0 / jnp.sqrt(jnp.float32(fan_in))
        w = jax.random.uniform(kw, (fan_in, fan_out), jnp.float32, -bound, bound)
        b = jax.random.uniform(kb, (1, fan_out), jnp.float32, -bound, bound)
        return w, b

    k1, k2, k3 = jax.random.split(key, 3)
    w1, b1 = linear(k1, n1, n2)
    w2, b2 = linear(k2, n2, n3)
    w3, b3 = linear(k3, n3, 1)
    return w1, b1, w2, b2, w3, b3


def fnn_reference(x, w1, b1, w2, b2, w3, b3):
    """Pure-f32 reference with the exact PyTorch-module semantics."""
    h1 = jax.nn.sigmoid(x @ w1 + b1)
    h2 = jax.nn.softplus(h1 @ w2 + b2)
    return h2 @ w3 + b3


if __name__ == "__main__":
    n1, n2, n3 = 16, 32, 24
    key = jax.random.PRNGKey(0)
    kx, kp, kx2 = jax.random.split(key, 3)
    params = init_fnn_params(kp, n1, n2, n3)

    # small case (single tile), f32 activation path -> tight tolerance vs exact reference
    B = 8
    x = jax.random.normal(kx, (B, n1), jnp.float32)
    out = jax.block_until_ready(fnn_forward(x, *params, act_dtype=jnp.float32))
    ref = fnn_reference(x, *params)
    assert out.shape == (B, 1), out.shape
    assert jnp.allclose(out, ref, atol=1e-2, rtol=1e-2), "mismatch vs reference (small)"

    # larger, non-multiple batch exercising the multi-step grid, even-step megacore split
    # and the ragged last block; default (per-generation) activation path.
    B2 = 2050
    x2 = jax.random.normal(kx2, (B2, n1), jnp.float32)
    out2 = jax.block_until_ready(fnn_forward(x2, *params, max_tile=512))
    ref2 = fnn_reference(x2, *params)
    assert out2.shape == (B2, 1), out2.shape
    assert jnp.allclose(out2, ref2, atol=5e-2, rtol=5e-2), "mismatch vs reference (tiled)"

    print("KERNEL_OK")
</pallas_src>

<mosaic_0001>
module attributes {stable_mosaic.version = 11 : i64} {
  func.func @_fnn_kernel(%arg0: i32, %arg1: memref<8x16xf32, #tpu.memory_space<vmem>>, %arg2: memref<16x32xbf16, #tpu.memory_space<vmem>>, %arg3: memref<1x32xf32, #tpu.memory_space<vmem>>, %arg4: memref<32x24xbf16, #tpu.memory_space<vmem>>, %arg5: memref<1x24xf32, #tpu.memory_space<vmem>>, %arg6: memref<24x1xbf16, #tpu.memory_space<vmem>>, %arg7: memref<1x1xf32, #tpu.memory_space<smem>>, %arg8: memref<8x1xf32, #tpu.memory_space<vmem>>) attributes {dimension_semantics = [#tpu.dimension_semantics<parallel>], iteration_bounds = array<i64: 1>, scalar_prefetch = 0 : i64, scratch_operands = 0 : i64, tpu.core_type = #tpu.core_type<tc>, window_params = [{transform_indices = @transform_0, window_bounds = array<i64: 8, 16>}, {pipeline_mode = #tpu.pipeline_mode<synchronous>, transform_indices = @transform_1, window_bounds = array<i64: 16, 32>}, {pipeline_mode = #tpu.pipeline_mode<synchronous>, transform_indices = @transform_2, window_bounds = array<i64: 1, 32>}, {pipeline_mode = #tpu.pipeline_mode<synchronous>, transform_indices = @transform_3, window_bounds = array<i64: 32, 24>}, {pipeline_mode = #tpu.pipeline_mode<synchronous>, transform_indices = @transform_4, window_bounds = array<i64: 1, 24>}, {pipeline_mode = #tpu.pipeline_mode<synchronous>, transform_indices = @transform_5, window_bounds = array<i64: 24, 1>}, {transform_indices = @transform_6, window_bounds = array<i64: 1, 1>}, {transform_indices = @transform_7, window_bounds = array<i64: 8, 1>}]} {
    %c0 = arith.constant 0 : index
    %c0_0 = arith.constant 0 : index
    %0 = vector.load %arg1[%c0, %c0_0] : memref<8x16xf32, #tpu.memory_space<vmem>>, vector<8x16xf32>
    %1 = arith.truncf %0 : vector<8x16xf32> to vector<8x16xbf16>
    %c0_1 = arith.constant 0 : index
    %c0_2 = arith.constant 0 : index
    %2 = vector.load %arg2[%c0_1, %c0_2] : memref<16x32xbf16, #tpu.memory_space<vmem>>, vector<16x32xbf16>
    %cst = arith.constant dense<0.000000e+00> : vector<8x32xf32>
    %3 = tpu.matmul %1, %2, %cst {dimension_numbers = #tpu.dot_dimension_numbers<[1], [0], [0], [1], [0, 0, 1, 1], [], []>} : vector<8x16xbf16>, vector<16x32xbf16>, vector<8x32xf32> -> vector<8x32xf32>
    %c0_3 = arith.constant 0 : index
    %c0_4 = arith.constant 0 : index
    %4 = vector.load %arg3[%c0_3, %c0_4] : memref<1x32xf32, #tpu.memory_space<vmem>>, vector<1x32xf32>
    %5 = vector.broadcast %4 : vector<1x32xf32> to vector<8x32xf32>
    %6 = arith.addf %3, %5 : vector<8x32xf32>
    %cst_5 = arith.constant 5.000000e-01 : f32
    %7 = vector.broadcast %cst_5 : f32 to vector<8x32xf32>
    %8 = arith.mulf %7, %6 : vector<8x32xf32>
    %9 = math.tanh %8 : vector<8x32xf32>
    %cst_6 = arith.constant 5.000000e-01 : f32
    %10 = vector.broadcast %cst_6 : f32 to vector<8x32xf32>
    %11 = arith.mulf %10, %9 : vector<8x32xf32>
    %cst_7 = arith.constant 5.000000e-01 : f32
    %12 = vector.broadcast %cst_7 : f32 to vector<8x32xf32>
    %13 = arith.addf %11, %12 : vector<8x32xf32>
    %14 = arith.truncf %13 : vector<8x32xf32> to vector<8x32xbf16>
    %c0_8 = arith.constant 0 : index
    %c0_9 = arith.constant 0 : index
    %15 = vector.load %arg4[%c0_8, %c0_9] : memref<32x24xbf16, #tpu.memory_space<vmem>>, vector<32x24xbf16>
    %cst_10 = arith.constant dense<0.000000e+00> : vector<8x24xf32>
    %16 = tpu.matmul %14, %15, %cst_10 {dimension_numbers = #tpu.dot_dimension_numbers<[1], [0], [0], [1], [0, 0, 1, 1], [], []>} : vector<8x32xbf16>, vector<32x24xbf16>, vector<8x24xf32> -> vector<8x24xf32>
    %c0_11 = arith.constant 0 : index
    %c0_12 = arith.constant 0 : index
    %17 = vector.load %arg5[%c0_11, %c0_12] : memref<1x24xf32, #tpu.memory_space<vmem>>, vector<1x24xf32>
    %18 = vector.broadcast %17 : vector<1x24xf32> to vector<8x24xf32>
    %19 = arith.addf %16, %18 : vector<8x24xf32>
    %cst_13 = arith.constant 0.000000e+00 : f32
    %20 = vector.broadcast %cst_13 : f32 to vector<8x24xf32>
    %21 = arith.maximumf %19, %20 : vector<8x24xf32>
    %22 = math.absf %19 : vector<8x24xf32>
    %cst_14 = arith.constant 0.000000e+00 : f32
    %23 = vector.broadcast %cst_14 : f32 to vector<8x24xf32>
    %24 = arith.subf %23, %22 : vector<8x24xf32>
    %25 = math.exp %24 : vector<8x24xf32>
    %26 = math.log1p %25 : vector<8x24xf32>
    %27 = arith.addf %21, %26 : vector<8x24xf32>
    %28 = arith.truncf %27 : vector<8x24xf32> to vector<8x24xbf16>
    %c0_15 = arith.constant 0 : index
    %c0_16 = arith.constant 0 : index
    %29 = vector.load %arg6[%c0_15, %c0_16] : memref<24x1xbf16, #tpu.memory_space<vmem>>, vector<24x1xbf16>
    %cst_17 = arith.constant dense<0.000000e+00> : vector<8x1xf32>
    %30 = tpu.matmul %28, %29, %cst_17 {dimension_numbers = #tpu.dot_dimension_numbers<[1], [0], [0], [1], [0, 0, 1, 1], [], []>} : vector<8x24xbf16>, vector<24x1xbf16>, vector<8x1xf32> -> vector<8x1xf32>
    %c0_18 = arith.constant 0 : index
    %c0_19 = arith.constant 0 : index
    %31 = memref.load %arg7[%c0_18, %c0_19] : memref<1x1xf32, #tpu.memory_space<smem>>
    %32 = vector.broadcast %31 : f32 to vector<8x1xf32>
    %33 = arith.addf %30, %32 : vector<8x1xf32>
    %c0_20 = arith.constant 0 : index
    %c0_21 = arith.constant 0 : index
    %34 = vector.load %arg8[%c0_20, %c0_21] : memref<8x1xf32, #tpu.memory_space<vmem>>, vector<8x1xf32>
    tpu.vector_store %arg8[%c0_20, %c0_21], %33 {strides = array<i32>} : memref<8x1xf32, #tpu.memory_space<vmem>>, vector<8x1xf32>,
    return
  }
  func.func @transform_0(%arg0: i32) -> (i32, i32) {
    %c0_i32 = arith.constant 0 : i32
    %c0_i32_0 = arith.constant 0 : i32
    return %arg0, %c0_i32 : i32, i32
  }
  func.func @transform_1(%arg0: i32) -> (i32, i32) {
    %c0_i32 = arith.constant 0 : i32
    %c0_i32_0 = arith.constant 0 : i32
    %c0_i32_1 = arith.constant 0 : i32
    return %c0_i32, %c0_i32_0 : i32, i32
  }
  func.func @transform_2(%arg0: i32) -> (i32, i32) {
    %c0_i32 = arith.constant 0 : i32
    %c0_i32_0 = arith.constant 0 : i32
    %c0_i32_1 = arith.constant 0 : i32
    return %c0_i32, %c0_i32_0 : i32, i32
  }
  func.func @transform_3(%arg0: i32) -> (i32, i32) {
    %c0_i32 = arith.constant 0 : i32
    %c0_i32_0 = arith.constant 0 : i32
    %c0_i32_1 = arith.constant 0 : i32
    return %c0_i32, %c0_i32_0 : i32, i32
  }
  func.func @transform_4(%arg0: i32) -> (i32, i32) {
    %c0_i32 = arith.constant 0 : i32
    %c0_i32_0 = arith.constant 0 : i32
    %c0_i32_1 = arith.constant 0 : i32
    return %c0_i32, %c0_i32_0 : i32, i32
  }
  func.func @transform_5(%arg0: i32) -> (i32, i32) {
    %c0_i32 = arith.constant 0 : i32
    %c0_i32_0 = arith.constant 0 : i32
    %c0_i32_1 = arith.constant 0 : i32
    return %c0_i32, %c0_i32_0 : i32, i32
  }
  func.func @transform_6(%arg0: i32) -> (i32, i32) {
    %c0_i32 = arith.constant 0 : i32
    %c0_i32_0 = arith.constant 0 : i32
    %c0_i32_1 = arith.constant 0 : i32
    return %c0_i32, %c0_i32_0 : i32, i32
  }
  func.func @transform_7(%arg0: i32) -> (i32, i32) {
    %c0_i32 = arith.constant 0 : i32
    %c0_i32_0 = arith.constant 0 : i32
    return %arg0, %c0_i32 : i32, i32
  }
}

</mosaic_0001>

<llo_original>
// kernel: tpu_custom_call.1
$region0: #{tpu_custom_call.1}
  #allocation0 [shape = 'u32[]', space=smem, size = 0x4, offset = 0x4, fixed_abs, tag = 'smem constant byte address 0x4 - core index']
  #allocation1 [shape = 'u32[144,128]{1,0:T(1,128)}', space=vmem, size = 0x12000, scoped, tag = 'internal scratch']
  #allocation2 [shape = 'f32[1,1]{1,0:T(1,128)S(6)}', space=smem, size = 0x200, scoped, tag = 'scoped memory for tpu_custom_call.1']
  %s0 = inlined_call_operand.vmem [shape: f32[8,16], index: 0, kind: input, shape index: {}]
  %s1 = inlined_call_operand.vmem [shape: bf16[16,32], index: 1, kind: input, shape index: {}]
  %s2 = inlined_call_operand.vmem [shape: f32[1,32], index: 2, kind: input, shape index: {}]
  %s3 = inlined_call_operand.vmem [shape: bf16[32,24], index: 3, kind: input, shape index: {}]
  %s4 = inlined_call_operand.vmem [shape: f32[1,24], index: 4, kind: input, shape index: {}]
  %s5 = inlined_call_operand.vmem [shape: bf16[24,1], index: 5, kind: input, shape index: {}]
  %s6 = inlined_call_operand.<no memory space> [shape: f32[1,1], index: 6, kind: input, shape index: {}]
  %s7 = inlined_call_operand.vmem [shape: f32[8,1], index: 7, kind: output, shape index: {}]
  %s8 = sld [smem:[#allocation0]]
  $region38: #{tpu_custom_call.1} parent=0
    _
  %s10 = ssub.s32 1, %s8
  %s11 = scalar_select 0, %s10, %s8
  %12 = sst [smem:[#allocation2]] %s6
  // Predicated region
  $region2: #{tpu_custom_call.1} parent=0 // pred_check
    _
  $region3: #{tpu_custom_call.1} parent=0 // pred_check_branch
    %14 = sbr.rel (0) target = $region5
  $region4: #{tpu_custom_call.1} parent=0 // pred_region
    _
  $region5: #{tpu_custom_call.1} parent=0 // pred_fallthru
    _
  // Predicated region
  $region6: #{tpu_custom_call.1} parent=0 // pred_check
    _
  $region7: #{tpu_custom_call.1} parent=0 // pred_check_branch
    %16 = sbr.rel (0) target = $region9
  $region8: #{tpu_custom_call.1} parent=0 // pred_region
    _
  $region9: #{tpu_custom_call.1} parent=0 // pred_fallthru
    _
  // Predicated region
  $region10: #{tpu_custom_call.1} parent=0 // pred_check
    _
  $region11: #{tpu_custom_call.1} parent=0 // pred_check_branch
    %18 = sbr.rel (0) target = $region13
  $region12: #{tpu_custom_call.1} parent=0 // pred_region
    _
  $region13: #{tpu_custom_call.1} parent=0 // pred_fallthru
    _
  // Predicated region
  $region14: #{tpu_custom_call.1} parent=0 // pred_check
    _
  $region15: #{tpu_custom_call.1} parent=0 // pred_check_branch
    %20 = sbr.rel (0) target = $region17
  $region16: #{tpu_custom_call.1} parent=0 // pred_region
    _
  $region17: #{tpu_custom_call.1} parent=0 // pred_fallthru
    _
  // Predicated region
  $region18: #{tpu_custom_call.1} parent=0 // pred_check
    _
  $region19: #{tpu_custom_call.1} parent=0 // pred_check_branch
    %22 = sbr.rel (0) target = $region21
  $region20: #{tpu_custom_call.1} parent=0 // pred_region
    _
  $region21: #{tpu_custom_call.1} parent=0 // pred_fallthru
    _
  // Predicated region
  $region22: #{tpu_custom_call.1} parent=0 // pred_check
    _
  $region23: #{tpu_custom_call.1} parent=0 // pred_check_branch
    %24 = sbr.rel (0) target = $region25
  $region24: #{tpu_custom_call.1} parent=0 // pred_region
    _
  $region25: #{tpu_custom_call.1} parent=0 // pred_fallthru
    _
  // Predicated region
  $region26: #{tpu_custom_call.1} parent=0 // pred_check
    _
  $region27: #{tpu_custom_call.1} parent=0 // pred_check_branch
    %26 = sbr.rel (0) target = $region29
  $region28: #{tpu_custom_call.1} parent=0 // pred_region
    _
  $region29: #{tpu_custom_call.1} parent=0 // pred_fallthru
    _
  %v28 = vld [vmem:[%s0] sm:$0xff]
  %v29 = vpack.c.bf16 %v28, %v28
  %v30 = vld [vmem:[%s1] sm:$0xf]
  %v31 = vld [vmem:[%s1 + $0x4] sm:$0xf]
  %v32 = vld [vmem:[%s2] sm:$0x1]
  %v34 = vlaneseq
  %v35 = vshrl.u32 %v34, 7
  %v36 = vsub.s32 0, %v35
  %v37 = vrot.slane %v32, %v36
  %v41 = vunpack.c.l.b16 %v30
  %v42 = vunpack.c.l.b16 %v31
  %v43 = vpack.c.b16 %v42, %v41
  %vm45 = vcmask 130048
  %v47 = vsel %vm45, %v29, 0
  %49 = vmatprep.subr.bf16.mxu0 0
  %50 = vmatpush1.bf16.msra.mxu0 %v43
  %51 = vmatprep.subr.bf16.mxu0 0
  %52 = vmatpush1.bf16.msra.mxu0 0
  %53 = vmatprep.subr.bf16.mxu0 0
  %54 = vmatpush1.bf16.msra.mxu0 0
  %55 = vmatprep.subr.bf16.mxu0 0
  %56 = vmatpush1.bf16.msra.mxu0 0
  %57 = vmatprep.subr.bf16.mxu0 0
  %58 = vmatpush1.bf16.msra.mxu0 0
  %59 = vmatprep.subr.bf16.mxu0 0
  %60 = vmatpush1.bf16.msra.mxu0 0
  %61 = vmatprep.subr.bf16.mxu0 0
  %62 = vmatpush1.bf16.msra.mxu0 0
  %63 = vmatprep.subr.bf16.mxu0 0
  %64 = vmatpush1.bf16.msra.mxu0 0
  %65 = vmatprep.subr.bf16.mxu0 0
  %66 = vmatpush1.bf16.msra.mxu0 0
  %67 = vmatprep.subr.bf16.mxu0 0
  %68 = vmatpush1.bf16.msra.mxu0 0
  %69 = vmatprep.subr.bf16.mxu0 0
  %70 = vmatpush1.bf16.msra.mxu0 0
  %71 = vmatprep.subr.bf16.mxu0 0
  %72 = vmatpush1.bf16.msra.mxu0 0
  %73 = vmatprep.subr.bf16.mxu0 0
  %74 = vmatpush1.bf16.msra.mxu0 0
  %75 = vmatprep.subr.bf16.mxu0 0
  %76 = vmatpush1.bf16.msra.mxu0 0
  %77 = vmatprep.subr.bf16.mxu0 0
  %78 = vmatpush1.bf16.msra.mxu0 0
  %79 = vmatprep.subr.bf16.mxu0 0
  %80 = vmatpush1.bf16.msra.mxu0 0
  %81 = vmatprep.mubr.bf16.mxu0 0
  %82 = vmatmul.mubr.bf16.gmra.mrb[0].mxu0 %v47
  %v83 = vpop.f32.mrb[0].mxu0
  %v84 = vadd.f32 %v37, %v83
  %v85 = vpop.f32.mrb[0].mxu0
  %v86 = vpop.f32.mrb[0].mxu0
  %v87 = vpop.f32.mrb[0].mxu0
  %88 = vdwg.mxu0
  %v89 = vmul.f32 %v84, 0.5
  %v90 = vtanh.pop %v89
  %v91 = vmul.f32 %v90, 0.5
  %v92 = vadd.f32 %v91, 0.5
  %v93 = vpack.c.bf16 %v92, %v92
  %v94 = vld [vmem:[%s3] sm:$0xf]
  %v95 = vld [vmem:[%s3 + $0x4] sm:$0xf]
  %v96 = vld [vmem:[%s3 + $0x8] sm:$0xf]
  %v97 = vld [vmem:[%s3 + $0xc] sm:$0xf]
  %v98 = vld [vmem:[%s4] sm:$0x1]
  %v100 = vlaneseq
  %v101 = vshrl.u32 %v100, 7
  %v102 = vsub.s32 0, %v101
  %v103 = vrot.slane %v98, %v102
  %v109 = vunpack.c.l.b16 %v94
  %v110 = vunpack.c.l.b16 %v95
  %v111 = vunpack.c.l.b16 %v96
  %v112 = vunpack.c.l.b16 %v97
  %v113 = vpack.c.b16 %v110, %v109
  %v114 = vpack.c.b16 %v112, %v111
  %vm117 = vcmask 261120
  %v119 = vsel %vm117, %v93, 0
  %121 = vmatprep.subr.bf16.mxu0 0
  %122 = vmatpush1.bf16.msra.mxu0 %v113
  %123 = vmatprep.subr.bf16.mxu0 0
  %124 = vmatpush1.bf16.msra.mxu0 %v114
  %125 = vmatprep.subr.bf16.mxu0 0
  %126 = vmatpush1.bf16.msra.mxu0 0
  %127 = vmatprep.subr.bf16.mxu0 0
  %128 = vmatpush1.bf16.msra.mxu0 0
  %129 = vmatprep.subr.bf16.mxu0 0
  %130 = vmatpush1.bf16.msra.mxu0 0
  %131 = vmatprep.subr.bf16.mxu0 0
  %132 = vmatpush1.bf16.msra.mxu0 0
  %133 = vmatprep.subr.bf16.mxu0 0
  %134 = vmatpush1.bf16.msra.mxu0 0
  %135 = vmatprep.subr.bf16.mxu0 0
  %136 = vmatpush1.bf16.msra.mxu0 0
  %137 = vmatprep.subr.bf16.mxu0 0
  %138 = vmatpush1.bf16.msra.mxu0 0
  %139 = vmatprep.subr.bf16.mxu0 0
  %140 = vmatpush1.bf16.msra.mxu0 0
  %141 = vmatprep.subr.bf16.mxu0 0
  %142 = vmatpush1.bf16.msra.mxu0 0
  %143 = vmatprep.subr.bf16.mxu0 0
  %144 = vmatpush1.bf16.msra.mxu0 0
  %145 = vmatprep.subr.bf16.mxu0 0
  %146 = vmatpush1.bf16.msra.mxu0 0
  %147 = vmatprep.subr.bf16.mxu0 0
  %148 = vmatpush1.bf16.msra.mxu0 0
  %149 = vmatprep.subr.bf16.mxu0 0
  %150 = vmatpush1.bf16.msra.mxu0 0
  %151 = vmatprep.subr.bf16.mxu0 0
  %152 = vmatpush1.bf16.msra.mxu0 0
  %153 = vmatprep.mubr.bf16.mxu0 0
  %154 = vmatmul.mubr.bf16.gmra.mrb[0].mxu0 %v119
  %v155 = vpop.f32.mrb[0].mxu0
  %v156 = vadd.f32 %v103, %v155
  %v157 = vpop.f32.mrb[0].mxu0
  %v158 = vpop.f32.mrb[0].mxu0
  %v159 = vpop.f32.mrb[0].mxu0
  %160 = vdwg.mxu0
  %v161 = vmax.f32 %v156, 0.0
  %v162 = vand.u32 2147483647, %v156
  %v163 = vsub.f32 0.0, %v162
  %v164 = vmul.f32 %v163, 1.442695
  %v165 = vpow.pop %v164
  %v166 = vadd.f32 %v165, 1.0
  %v167 = vlog2.pop %v166
  %v168 = vmul.f32 %v167, 0.6931472
  %v169 = vmul.f32 -0.5, %v165
  %v170 = vadd.f32 %v169, 1.0
  %v171 = vmul.f32 %v170, %v165
  %v172 = vand.u32 2147483647, %v165
  %vm173 = vcmp.lt.f32.partialorder %v172, 0.0004427343
  %v174 = vsel %vm173, %v171, %v168
  %v175 = vadd.f32 %v161, %v174
  %v176 = vpack.c.bf16 %v175, %v175
  %v177 = vld [vmem:[%s5] sm:$0xf]
  %v178 = vld [vmem:[%s5 + $0x4] sm:$0xf]
  %v179 = vld [vmem:[%s5 + $0x8] sm:$0xf]
  %s180 = sld [smem:[#allocation2]]
  %v181 = vstv %s180
  %v185 = vunpack.c.l.b16 %v177
  %v186 = vunpack.c.l.b16 %v178
  %v187 = vunpack.c.l.b16 %v179
  %v188 = vpack.c.b16 %v186, %v185
  %v189 = vpack.c.b16 %v187, %v187
  %vm191 = vcmask 195584
  %v193 = vsel %vm191, %v176, 0
  %vm195 = vcmask 1043456
  %v197 = vsel %vm195, %v189, 0
  %199 = vmatprep.subr.bf16.mxu0 0
  %200 = vmatpush1.bf16.msra.mxu0 %v188
  %201 = vmatprep.subr.bf16.mxu0 0
  %202 = vmatpush1.bf16.msra.mxu0 %v197
  %203 = vmatprep.subr.bf16.mxu0 0
  %204 = vmatpush1.bf16.msra.mxu0 0
  %205 = vmatprep.subr.bf16.mxu0 0
  %206 = vmatpush1.bf16.msra.mxu0 0
  %207 = vmatprep.subr.bf16.mxu0 0
  %208 = vmatpush1.bf16.msra.mxu0 0
  %209 = vmatprep.subr.bf16.mxu0 0
  %210 = vmatpush1.bf16.msra.mxu0 0
  %211 = vmatprep.subr.bf16.mxu0 0
  %212 = vmatpush1.bf16.msra.mxu0 0
  %213 = vmatprep.subr.bf16.mxu0 0
  %214 = vmatpush1.bf16.msra.mxu0 0
  %215 = vmatprep.subr.bf16.mxu0 0
  %216 = vmatpush1.bf16.msra.mxu0 0
  %217 = vmatprep.subr.bf16.mxu0 0
  %218 = vmatpush1.bf16.msra.mxu0 0
  %219 = vmatprep.subr.bf16.mxu0 0
  %220 = vmatpush1.bf16.msra.mxu0 0
  %221 = vmatprep.subr.bf16.mxu0 0
  %222 = vmatpush1.bf16.msra.mxu0 0
  %223 = vmatprep.subr.bf16.mxu0 0
  %224 = vmatpush1.bf16.msra.mxu0 0
  %225 = vmatprep.subr.bf16.mxu0 0
  %226 = vmatpush1.bf16.msra.mxu0 0
  %227 = vmatprep.subr.bf16.mxu0 0
  %228 = vmatpush1.bf16.msra.mxu0 0
  %229 = vmatprep.subr.bf16.mxu0 0
  %230 = vmatpush1.bf16.msra.mxu0 0
  %231 = vmatprep.mubr.bf16.mxu0 0
  %232 = vmatmul.mubr.bf16.gmra.mrb[0].mxu0 %v193
  %v233 = vpop.f32.mrb[0].mxu0
  %v234 = vadd.f32 %v181, %v233
  %v235 = vpop.f32.mrb[0].mxu0
  %v236 = vpop.f32.mrb[0].mxu0
  %v237 = vpop.f32.mrb[0].mxu0
  %238 = vdwg.mxu0
  %vm239 = vcmask 7168
  %240 = vst.msk [vmem:[%s7] sm:$0xff] %vm239, %v234
  // Predicated region
  $region30: #{tpu_custom_call.1} parent=0 // pred_check
    _
  $region31: #{tpu_custom_call.1} parent=0 // pred_check_branch
    %242 = sbr.rel (0) target = $region33
  $region32: #{tpu_custom_call.1} parent=0 // pred_region
    _
  $region33: #{tpu_custom_call.1} parent=0 // pred_fallthru
    _
  // Predicated region
  $region34: #{tpu_custom_call.1} parent=0 // pred_check
    _
  $region35: #{tpu_custom_call.1} parent=0 // pred_check_branch
    %244 = sbr.rel (0) target = $region37
  $region36: #{tpu_custom_call.1} parent=0 // pred_region
    _
  $region37: #{tpu_custom_call.1} parent=0 // pred_fallthru
    _

</llo_original>
